<compile_context>
chip_gen: v7x
topology: tpu7x:2x2x1
jax: 0.10.0
libtpu: 0.0.40
codegen_flags: <defaults>
</compile_context>

<pallas_src>
import functools
import math

import jax
import jax.numpy as jnp
from jax.experimental import pallas as pl
from jax.experimental.pallas import tpu as pltpu


# ----------------------------------------------------------------------------
# Kernels
# ----------------------------------------------------------------------------

def _squash_packed_kernel(s_ref, seg_ref, o_ref, *, eps):
    """Lane-packed path: each 128-lane row holds 128/D capsules of width D.

    Per-capsule sum of squares (and its broadcast back to every lane of the
    capsule) is computed with MXU matmuls against a block-diagonal 0/1 matrix.
    """
    s_in = s_ref[...]                                    # (TR, 128), input dtype
    s = s_in.astype(jnp.float32)
    sq = s * s                                           # (TR, 128) f32

    # hi/lo split: sq_hi is exactly bf16-representable, sq_lo carries the
    # remainder, and the 0/1 segment matrix is exact in bf16, so two bf16 MXU
    # matmuls with f32 accumulation reproduce the f32 segmented sum ~exactly.
    m = seg_ref[...]                                     # (128, 128) bf16, 0/1
    sq_hi = sq.astype(jnp.bfloat16)
    sq_lo = (sq - sq_hi.astype(jnp.float32)).astype(jnp.bfloat16)
    seg_sq = (jnp.dot(sq_hi, m, preferred_element_type=jnp.float32)
              + jnp.dot(sq_lo, m, preferred_element_type=jnp.float32))

    # Exact divide/sqrt (no approx reciprocal) so capsule lengths stay < 1.
    scale = seg_sq / ((1.0 + seg_sq) * jnp.sqrt(seg_sq + eps))
    # Final multiply/store in the input dtype (halves store bytes for bf16).
    o_ref[...] = (s_in * scale.astype(s_in.dtype)).astype(o_ref.dtype)


def _squash_rows_kernel(s_ref, o_ref, *, eps):
    """Plain path: one capsule per row, norm along the lane axis."""
    s_in = s_ref[...]                                    # (TR, D)
    s = s_in.astype(jnp.float32)
    sq = jnp.sum(s * s, axis=-1, keepdims=True)          # (TR, 1)
    scale = sq / ((1.0 + sq) * jnp.sqrt(sq + eps))
    o_ref[...] = (s_in * scale.astype(s_in.dtype)).astype(o_ref.dtype)


# ----------------------------------------------------------------------------
# Tiling helpers
# ----------------------------------------------------------------------------

_SUBLANE_GRANULE = {4: 8, 2: 16, 1: 32}   # itemsize -> sublane multiple


def _sublane_granule(dtype):
    return _SUBLANE_GRANULE.get(jnp.dtype(dtype).itemsize, 8)


def _pick_row_tile(rows, lane_width, dtype, target_bytes):
    """Row tile: ~target_bytes per block, dtype-aware granule, >=2 grid steps."""
    g = _sublane_granule(dtype)
    if rows <= g:
        return rows                               # full-extent block (always legal)
    bytes_per_row = lane_width * jnp.dtype(dtype).itemsize
    tr = max(g, (target_bytes // bytes_per_row) // g * g)
    rows_g = pl.cdiv(rows, g) * g                 # row extent rounded up to granule
    tr = min(tr, rows_g)
    # Prefer >= 2 grid steps so both v7x TensorCores get work.
    if tr >= rows_g and rows_g >= 2 * g:
        tr = pl.cdiv(rows_g // g, 2) * g
    return tr


# ----------------------------------------------------------------------------
# Wrapper
# ----------------------------------------------------------------------------

def pallas_squash(s, *, dim=-1, eps=1e-8, target_block_bytes=2 * 1024 * 1024):
    """Capsule squashing along `dim`.  Same shape/dtype as the input."""
    ndim = s.ndim
    axis = dim % ndim
    if axis != ndim - 1:
        # TODO(synk): handle dim=-2 with an in-kernel sublane reduce instead of
        # paying two HBM transpose passes here.
        s_l = jnp.moveaxis(s, axis, -1)
        out = pallas_squash(s_l, dim=-1, eps=eps,
                            target_block_bytes=target_block_bytes)
        return jnp.moveaxis(out, -1, axis)

    orig_shape = s.shape
    D = orig_shape[-1]
    R = math.prod(orig_shape[:-1]) if ndim > 1 else 1
    total = R * D

    packed = (D < 128) and (128 % D == 0) and (total % 128 == 0) and (total >= 128)
    if packed:
        lane_w = 128
        rows = total // 128
        x2 = s.reshape(rows, lane_w)              # free row-major view, lane-dense
    else:
        lane_w = D
        rows = R
        x2 = s.reshape(rows, lane_w)

    tr = _pick_row_tile(rows, lane_w, s.dtype, target_block_bytes)
    grid = (pl.cdiv(rows, tr),)                   # partial last block handled by Pallas

    if packed:
        # Block-diagonal 0/1 segment matrix: M[k, j] = 1 iff lanes k, j belong to
        # the same capsule (same D-wide segment).  Exactly representable in bf16.
        row_seg = jax.lax.broadcasted_iota(jnp.int32, (128, 128), 0) // D
        col_seg = jax.lax.broadcasted_iota(jnp.int32, (128, 128), 1) // D
        seg = (row_seg == col_seg).astype(jnp.bfloat16)
        kernel = functools.partial(_squash_packed_kernel, eps=eps)
        in_specs = [pl.BlockSpec((tr, lane_w), lambda i: (i, 0)),
                    pl.BlockSpec((128, 128), lambda i: (0, 0))]
        args = (x2, seg)
    else:
        kernel = functools.partial(_squash_rows_kernel, eps=eps)
        in_specs = [pl.BlockSpec((tr, lane_w), lambda i: (i, 0))]
        args = (x2,)

    out = pl.pallas_call(
        kernel,
        out_shape=jax.ShapeDtypeStruct((rows, lane_w), s.dtype),
        grid=grid,
        in_specs=in_specs,
        out_specs=pl.BlockSpec((tr, lane_w), lambda i: (i, 0)),
        compiler_params=pltpu.CompilerParams(
            dimension_semantics=("parallel",)),
    )(*args)

    return out.reshape(orig_shape)


# ----------------------------------------------------------------------------
# Pure-JAX reference
# ----------------------------------------------------------------------------

def squash_ref(s, dim=-1, eps=1e-8):
    sq = jnp.sum(s * s, axis=dim, keepdims=True)
    return s * sq / (1.0 + sq) / jnp.sqrt(sq + eps)


# ----------------------------------------------------------------------------
# Main
# ----------------------------------------------------------------------------

if __name__ == "__main__":
    batch, num_capsules, capsule_dim = 2, 16, 32

    key = jax.random.PRNGKey(0)
    s = jax.random.normal(key, (batch, num_capsules, capsule_dim), dtype=jnp.float32)
    s = s.at[0, 0].set(0.0)                       # exercise the zero-capsule path

    fwd = jax.jit(pallas_squash)
    out = fwd(s)
    jax.block_until_ready(out)

    ref = squash_ref(s)
    assert out.shape == s.shape and out.dtype == s.dtype
    assert bool(jnp.all(jnp.isfinite(out)))
    err = float(jnp.max(jnp.abs(out - ref)))
    assert err < 1e-4, err
    lens = jnp.linalg.norm(out, axis=-1)
    assert bool(jnp.all(lens < 1.0)) and bool(jnp.all(lens >= 0.0))

    # Second check: capsule_dim that does not divide 128 -> plain path with a
    # partial last row-block (rows=15, tile=8).
    s2 = jax.random.normal(jax.random.PRNGKey(1), (3, 5, 200), dtype=jnp.float32)
    out2 = jax.jit(pallas_squash)(s2)
    jax.block_until_ready(out2)
    err2 = float(jnp.max(jnp.abs(out2 - squash_ref(s2))))
    assert err2 < 1e-4, err2

    print("KERNEL_OK")
</pallas_src>

<mosaic_0001>
module attributes {stable_mosaic.version = 11 : i64} {
  func.func @_squash_packed_kernel(%arg0: i32, %arg1: memref<8x128xf32, #tpu.memory_space<vmem>>, %arg2: memref<128x128xbf16, #tpu.memory_space<vmem>>, %arg3: memref<8x128xf32, #tpu.memory_space<vmem>>) attributes {dimension_semantics = [#tpu.dimension_semantics<parallel>], iteration_bounds = array<i64: 1>, scalar_prefetch = 0 : i64, scratch_operands = 0 : i64, tpu.core_type = #tpu.core_type<tc>, window_params = [{transform_indices = @transform_0, window_bounds = array<i64: 8, 128>}, {pipeline_mode = #tpu.pipeline_mode<synchronous>, transform_indices = @transform_1, window_bounds = array<i64: 128, 128>}, {transform_indices = @transform_2, window_bounds = array<i64: 8, 128>}]} {
    %c0 = arith.constant 0 : index
    %c0_0 = arith.constant 0 : index
    %0 = vector.load %arg1[%c0, %c0_0] : memref<8x128xf32, #tpu.memory_space<vmem>>, vector<8x128xf32>
    %1 = arith.mulf %0, %0 : vector<8x128xf32>
    %c0_1 = arith.constant 0 : index
    %c0_2 = arith.constant 0 : index
    %2 = vector.load %arg2[%c0_1, %c0_2] : memref<128x128xbf16, #tpu.memory_space<vmem>>, vector<128x128xbf16>
    %3 = arith.truncf %1 : vector<8x128xf32> to vector<8x128xbf16>
    %4 = arith.extf %3 : vector<8x128xbf16> to vector<8x128xf32>
    %5 = arith.subf %1, %4 : vector<8x128xf32>
    %6 = arith.truncf %5 : vector<8x128xf32> to vector<8x128xbf16>
    %cst = arith.constant dense<0.000000e+00> : vector<8x128xf32>
    %7 = tpu.matmul %3, %2, %cst {dimension_numbers = #tpu.dot_dimension_numbers<[1], [0], [0], [1], [0, 0, 1, 1], [], []>} : vector<8x128xbf16>, vector<128x128xbf16>, vector<8x128xf32> -> vector<8x128xf32>
    %cst_3 = arith.constant dense<0.000000e+00> : vector<8x128xf32>
    %8 = tpu.matmul %6, %2, %cst_3 {dimension_numbers = #tpu.dot_dimension_numbers<[1], [0], [0], [1], [0, 0, 1, 1], [], []>} : vector<8x128xbf16>, vector<128x128xbf16>, vector<8x128xf32> -> vector<8x128xf32>
    %9 = arith.addf %7, %8 : vector<8x128xf32>
    %cst_4 = arith.constant 1.000000e+00 : f32
    %10 = vector.broadcast %cst_4 : f32 to vector<8x128xf32>
    %11 = arith.addf %10, %9 : vector<8x128xf32>
    %cst_5 = arith.constant 9.99999993E-9 : f32
    %12 = vector.broadcast %cst_5 : f32 to vector<8x128xf32>
    %13 = arith.addf %9, %12 : vector<8x128xf32>
    %14 = math.sqrt %13 : vector<8x128xf32>
    %15 = arith.mulf %11, %14 : vector<8x128xf32>
    %16 = arith.divf %9, %15 : vector<8x128xf32>
    %17 = arith.mulf %0, %16 : vector<8x128xf32>
    %c0_6 = arith.constant 0 : index
    %c0_7 = arith.constant 0 : index
    %18 = vector.load %arg3[%c0_6, %c0_7] : memref<8x128xf32, #tpu.memory_space<vmem>>, vector<8x128xf32>
    tpu.vector_store %arg3[%c0_6, %c0_7], %17 {strides = array<i32>} : memref<8x128xf32, #tpu.memory_space<vmem>>, vector<8x128xf32>,
    return
  }
  func.func @transform_0(%arg0: i32) -> (i32, i32) {
    %c0_i32 = arith.constant 0 : i32
    %c0_i32_0 = arith.constant 0 : i32
    return %arg0, %c0_i32 : i32, i32
  }
  func.func @transform_1(%arg0: i32) -> (i32, i32) {
    %c0_i32 = arith.constant 0 : i32
    %c0_i32_0 = arith.constant 0 : i32
    %c0_i32_1 = arith.constant 0 : i32
    return %c0_i32, %c0_i32_0 : i32, i32
  }
  func.func @transform_2(%arg0: i32) -> (i32, i32) {
    %c0_i32 = arith.constant 0 : i32
    %c0_i32_0 = arith.constant 0 : i32
    return %arg0, %c0_i32 : i32, i32
  }
}

</mosaic_0001>

<llo_original>
// kernel: pallas_squash.1
$region0: #{pallas_squash.1}
  #allocation0 [shape = 'u32[]', space=smem, size = 0x4, offset = 0x4, fixed_abs, tag = 'smem constant byte address 0x4 - core index']
  #allocation1 [shape = 'u32[144,128]{1,0:T(1,128)}', space=vmem, size = 0x12000, scoped, tag = 'internal scratch']
  %s0 = inlined_call_operand.vmem [shape: f32[8,128], index: 0, kind: input, shape index: {}]
  %s1 = inlined_call_operand.vmem [shape: bf16[128,128], index: 1, kind: input, shape index: {}]
  %s2 = inlined_call_operand.vmem [shape: f32[8,128], index: 2, kind: output, shape index: {}]
  %s3 = sld [smem:[#allocation0]]
  $region18: #{pallas_squash.1} parent=0
    _
  %s5 = ssub.s32 1, %s3
  %s6 = scalar_select 0, %s5, %s3
  // Predicated region
  $region2: #{pallas_squash.1} parent=0 // pred_check
    _
  $region3: #{pallas_squash.1} parent=0 // pred_check_branch
    %8 = sbr.rel (0) target = $region5
  $region4: #{pallas_squash.1} parent=0 // pred_region
    _
  $region5: #{pallas_squash.1} parent=0 // pred_fallthru
    _
  // Predicated region
  $region6: #{pallas_squash.1} parent=0 // pred_check
    _
  $region7: #{pallas_squash.1} parent=0 // pred_check_branch
    %10 = sbr.rel (0) target = $region9
  $region8: #{pallas_squash.1} parent=0 // pred_region
    _
  $region9: #{pallas_squash.1} parent=0 // pred_fallthru
    _
  %v12 = vld [vmem:[%s0] sm:$0xff]
  %v13 = vmul.f32 %v12, %v12
  %v14 = vld [vmem:[%s1] sm:$0xf]
  %v15 = vld [vmem:[%s1 + $0x4] sm:$0xf]
  %v16 = vld [vmem:[%s1 + $0x8] sm:$0xf]
  %v17 = vld [vmem:[%s1 + $0xc] sm:$0xf]
  %v18 = vld [vmem:[%s1 + $0x10] sm:$0xf]
  %v19 = vld [vmem:[%s1 + $0x14] sm:$0xf]
  %v20 = vld [vmem:[%s1 + $0x18] sm:$0xf]
  %v21 = vld [vmem:[%s1 + $0x1c] sm:$0xf]
  %v22 = vld [vmem:[%s1 + $0x20] sm:$0xf]
  %v23 = vld [vmem:[%s1 + $0x24] sm:$0xf]
  %v24 = vld [vmem:[%s1 + $0x28] sm:$0xf]
  %v25 = vld [vmem:[%s1 + $0x2c] sm:$0xf]
  %v26 = vld [vmem:[%s1 + $0x30] sm:$0xf]
  %v27 = vld [vmem:[%s1 + $0x34] sm:$0xf]
  %v28 = vld [vmem:[%s1 + $0x38] sm:$0xf]
  %v29 = vld [vmem:[%s1 + $0x3c] sm:$0xf]
  %v30 = vpack.c.bf16 %v13, %v13
  %v31 = vunpack.c.l.bf16 %v30
  %v32 = vsub.f32 %v13, %v31
  %v33 = vpack.c.bf16 %v32, %v32
  %v50 = vunpack.c.l.b16 %v14
  %v51 = vunpack.c.l.b16 %v15
  %v52 = vunpack.c.l.b16 %v16
  %v53 = vunpack.c.l.b16 %v17
  %v54 = vunpack.c.l.b16 %v18
  %v55 = vunpack.c.l.b16 %v19
  %v56 = vunpack.c.l.b16 %v20
  %v57 = vunpack.c.l.b16 %v21
  %v58 = vunpack.c.l.b16 %v22
  %v59 = vunpack.c.l.b16 %v23
  %v60 = vunpack.c.l.b16 %v24
  %v61 = vunpack.c.l.b16 %v25
  %v62 = vunpack.c.l.b16 %v26
  %v63 = vunpack.c.l.b16 %v27
  %v64 = vunpack.c.l.b16 %v28
  %v65 = vunpack.c.l.b16 %v29
  %v66 = vpack.c.b16 %v51, %v50
  %v67 = vpack.c.b16 %v53, %v52
  %v68 = vpack.c.b16 %v55, %v54
  %v69 = vpack.c.b16 %v57, %v56
  %v70 = vpack.c.b16 %v59, %v58
  %v71 = vpack.c.b16 %v61, %v60
  %v72 = vpack.c.b16 %v63, %v62
  %v73 = vpack.c.b16 %v65, %v64
  %82 = vmatprep.subr.bf16.mxu0 0
  %83 = vmatpush1.bf16.msra.mxu0 %v66
  %84 = vmatprep.subr.bf16.mxu0 0
  %85 = vmatpush1.bf16.msra.mxu0 %v67
  %86 = vmatprep.subr.bf16.mxu0 0
  %87 = vmatpush1.bf16.msra.mxu0 %v68
  %88 = vmatprep.subr.bf16.mxu0 0
  %89 = vmatpush1.bf16.msra.mxu0 %v69
  %90 = vmatprep.subr.bf16.mxu0 0
  %91 = vmatpush1.bf16.msra.mxu0 %v70
  %92 = vmatprep.subr.bf16.mxu0 0
  %93 = vmatpush1.bf16.msra.mxu0 %v71
  %94 = vmatprep.subr.bf16.mxu0 0
  %95 = vmatpush1.bf16.msra.mxu0 %v72
  %96 = vmatprep.subr.bf16.mxu0 0
  %97 = vmatpush1.bf16.msra.mxu0 %v73
  %98 = vmatprep.subr.bf16.mxu0 0
  %99 = vmatpush1.bf16.msra.mxu0 0
  %100 = vmatprep.subr.bf16.mxu0 0
  %101 = vmatpush1.bf16.msra.mxu0 0
  %102 = vmatprep.subr.bf16.mxu0 0
  %103 = vmatpush1.bf16.msra.mxu0 0
  %104 = vmatprep.subr.bf16.mxu0 0
  %105 = vmatpush1.bf16.msra.mxu0 0
  %106 = vmatprep.subr.bf16.mxu0 0
  %107 = vmatpush1.bf16.msra.mxu0 0
  %108 = vmatprep.subr.bf16.mxu0 0
  %109 = vmatpush1.bf16.msra.mxu0 0
  %110 = vmatprep.subr.bf16.mxu0 0
  %111 = vmatpush1.bf16.msra.mxu0 0
  %112 = vmatprep.subr.bf16.mxu0 0
  %113 = vmatpush1.bf16.msra.mxu0 0
  %114 = vmatprep.mubr.bf16.mxu0 0
  %115 = vmatmul.mubr.bf16.gmra.mrb[0].mxu0 %v33
  %v116 = vpop.f32.mrb[0].mxu0
  %v117 = vadd.f32 0.0, %v116
  %v118 = vpop.f32.mrb[0].mxu0
  %v119 = vpop.f32.mrb[0].mxu0
  %v120 = vpop.f32.mrb[0].mxu0
  %121 = vdwg.mxu0
  %122 = vmatprep.subr.bf16.mxu0 0
  %123 = vmatpush1.bf16.msra.mxu0 %v66
  %124 = vmatprep.subr.bf16.mxu0 0
  %125 = vmatpush1.bf16.msra.mxu0 %v67
  %126 = vmatprep.subr.bf16.mxu0 0
  %127 = vmatpush1.bf16.msra.mxu0 %v68
  %128 = vmatprep.subr.bf16.mxu0 0
  %129 = vmatpush1.bf16.msra.mxu0 %v69
  %130 = vmatprep.subr.bf16.mxu0 0
  %131 = vmatpush1.bf16.msra.mxu0 %v70
  %132 = vmatprep.subr.bf16.mxu0 0
  %133 = vmatpush1.bf16.msra.mxu0 %v71
  %134 = vmatprep.subr.bf16.mxu0 0
  %135 = vmatpush1.bf16.msra.mxu0 %v72
  %136 = vmatprep.subr.bf16.mxu0 0
  %137 = vmatpush1.bf16.msra.mxu0 %v73
  %138 = vmatprep.subr.bf16.mxu0 0
  %139 = vmatpush1.bf16.msra.mxu0 0
  %140 = vmatprep.subr.bf16.mxu0 0
  %141 = vmatpush1.bf16.msra.mxu0 0
  %142 = vmatprep.subr.bf16.mxu0 0
  %143 = vmatpush1.bf16.msra.mxu0 0
  %144 = vmatprep.subr.bf16.mxu0 0
  %145 = vmatpush1.bf16.msra.mxu0 0
  %146 = vmatprep.subr.bf16.mxu0 0
  %147 = vmatpush1.bf16.msra.mxu0 0
  %148 = vmatprep.subr.bf16.mxu0 0
  %149 = vmatpush1.bf16.msra.mxu0 0
  %150 = vmatprep.subr.bf16.mxu0 0
  %151 = vmatpush1.bf16.msra.mxu0 0
  %152 = vmatprep.subr.bf16.mxu0 0
  %153 = vmatpush1.bf16.msra.mxu0 0
  %154 = vmatprep.mubr.bf16.mxu0 0
  %155 = vmatmul.mubr.bf16.gmra.mrb[0].mxu0 %v30
  %v156 = vpop.f32.mrb[0].mxu0
  %v157 = vadd.f32 %v117, %v156
  %v158 = vpop.f32.mrb[0].mxu0
  %v159 = vpop.f32.mrb[0].mxu0
  %v160 = vpop.f32.mrb[0].mxu0
  %161 = vdwg.mxu0
  %v162 = vadd.f32 %v157, 1.0
  %v163 = vadd.f32 %v157, 1e-08
  %v164 = vrsqrt.pop %v163
  %v165 = vmul.f32 %v163, %v164
  %vm166 = vcmp.eq.f32.partialorder %v163, inf
  %v167 = vsel %vm166, %v163, %v165
  %vm168 = vcmp.eq.f32.partialorder %v163, 0.0
  %v169 = vand.u32 %v163, 2147483648
  %v170 = vsel %vm168, %v169, %v167
  %v171 = vmul.f32 %v162, %v170
  %v172 = vrcp.pop %v171
  %v173 = vmul.f32 %v157, %v172
  %v174 = vmul.f32 %v12, %v173
  %175 = vst [vmem:[%s2] sm:$0xff] %v174
  // Predicated region
  $region10: #{pallas_squash.1} parent=0 // pred_check
    _
  $region11: #{pallas_squash.1} parent=0 // pred_check_branch
    %177 = sbr.rel (0) target = $region13
  $region12: #{pallas_squash.1} parent=0 // pred_region
    _
  $region13: #{pallas_squash.1} parent=0 // pred_fallthru
    _
  // Predicated region
  $region14: #{pallas_squash.1} parent=0 // pred_check
    _
  $region15: #{pallas_squash.1} parent=0 // pred_check_branch
    %179 = sbr.rel (0) target = $region17
  $region16: #{pallas_squash.1} parent=0 // pred_region
    _
  $region17: #{pallas_squash.1} parent=0 // pred_fallthru
    _

</llo_original>
